<compile_context>
chip_gen: v7x
topology: tpu7x:2x2x1
jax: 0.10.0
libtpu: 0.0.40
codegen_flags: <defaults>
</compile_context>

<pallas_src>
import functools

import jax
import jax.numpy as jnp
from jax import lax
from jax.experimental import pallas as pl
from jax.experimental.pallas import tpu as pltpu


# --------------------------------------------------------------------------- #
# Kernel
# --------------------------------------------------------------------------- #
def _converter_kernel(x_ref, w_ref, b_ref, o_ref, *, approximate_gelu):
    # ---- LayerNorm statistics (biased var, eps=1e-5, as nn.LayerNorm) ------- #
    # gamma/beta are already folded into w/b, so the kernel only normalizes.
    x = x_ref[...].astype(jnp.float32)                          # (tm, N)
    mean = jnp.mean(x, axis=-1, keepdims=True)
    xc = x - mean
    var = jnp.mean(xc * xc, axis=-1, keepdims=True)
    xn = (xc * lax.rsqrt(var + 1e-5)).astype(jnp.bfloat16)      # (tm, N) bf16

    # ---- Two MXU dots over static Ref slices of the stacked (2, N, N) weight.
    #      bf16 inputs, f32 accumulation; biases (gamma/beta-folded) in f32. -- #
    y1 = jnp.dot(xn, w_ref[0], preferred_element_type=jnp.float32) + b_ref[0]
    y2 = jnp.dot(xn, w_ref[1], preferred_element_type=jnp.float32) + b_ref[1]

    # ---- GELU ---------------------------------------------------------------#
    if approximate_gelu:
        # tanh approximation: tanh lowers to the otherwise-idle EUP slot,
        # freeing the saturated vector-ALU slot on v6e/v7x.
        c = 0.7978845608028654  # sqrt(2/pi)
        y2 = 0.5 * y2 * (1.0 + jnp.tanh(c * (y2 + 0.044715 * y2 * y2 * y2)))
    else:
        # exact erf GELU == torch.nn.GELU() default (module semantics).
        y2 = 0.5 * y2 * (1.0 + lax.erf(y2 * 0.7071067811865476))

    o_ref[...] = (y1 * y2).astype(o_ref.dtype)


# --------------------------------------------------------------------------- #
# Host-side helpers
# --------------------------------------------------------------------------- #
def _round_up(a, b):
    return (a + b - 1) // b * b


def _device_caps():
    """Return (vmem_limit_bytes, num_tensorcores) for the current device.

    Conservative by default (works on v7x's 64 MiB VMEM); raised only when a
    large-VMEM part is positively detected.
    """
    kind = ""
    try:
        kind = jax.devices()[0].device_kind.lower()
    except Exception:
        pass
    is_v7 = any(t in kind for t in ("v7", "tpu7", "7x"))
    big_vmem = any(t in kind for t in ("v2", "v3", "v4", "v5", "v6"))
    vmem_budget = (96 if (big_vmem and not is_v7) else 48) * 1024 * 1024
    try:  # refine against the reported capacity when the query is available
        cap = int(pltpu.get_tpu_info().vmem_capacity_bytes)
        vmem_budget = min(vmem_budget, int(0.75 * cap))
    except Exception:
        pass
    num_tc = 2 if is_v7 else 1
    return int(vmem_budget), num_tc


def _vmem_estimate(tm, n):
    """Rough per-step VMEM bytes (worst case: weights double-buffered)."""
    io = 2 * (tm * n * 4) * 2            # x + out blocks, double-buffered f32
    w = 2 * (2 * n * n * 2)              # stacked bf16 weights, 2 buffers
    b = 2 * (2 * n * 4)                  # fused biases
    scratch = 7 * tm * n * 4             # LN temps, y1/y2, gelu temps (rough)
    return io + w + b + scratch


def _pick_tm(m, n, vmem_budget, num_tc):
    m8 = _round_up(max(m, 1), 8)
    tm = _round_up(min(512, m8), 8)      # big rows tiles: fewer grid steps, long MXU runs
    while tm > 8 and _vmem_estimate(tm, n) > vmem_budget:
        tm = _round_up(tm // 2, 8)
    # Only split for parallelism on parts that actually have 2 TensorCores.
    if num_tc >= 2 and m > 8 and pl.cdiv(m, tm) < 2:
        tm = _round_up(pl.cdiv(m, 2), 8)
    return tm


def _build_call(kernel, m, n, tm, out_dtype, vmem_budget, single_buffer_consts):
    # Constant blocks (index_map always 0): single-buffer so they are VMEM
    # residents instead of 2x-buffered pipeline stages.
    const_kwargs = dict(pipeline_mode=pl.Buffered(1)) if single_buffer_consts else {}
    # TODO(synk): add an output-column grid axis (weight block (2, N, tn)) for
    # N > ~2048 so the resident bf16 weight stays under v7x's 64 MiB VMEM.
    in_specs = [
        pl.BlockSpec((tm, n), lambda i: (i, 0)),                         # x rows
        pl.BlockSpec((2, n, n), lambda i: (0, 0, 0), **const_kwargs),    # stacked bf16 W
        pl.BlockSpec((2, 1, n), lambda i: (0, 0, 0), **const_kwargs),    # fused biases
    ]
    return pl.pallas_call(
        kernel,
        out_shape=jax.ShapeDtypeStruct((m, n), out_dtype),
        grid_spec=pltpu.PrefetchScalarGridSpec(
            num_scalar_prefetch=0,
            grid=(pl.cdiv(m, tm),),                  # ragged last block handled by Pallas
            in_specs=in_specs,
            out_specs=pl.BlockSpec((tm, n), lambda i: (i, 0)),
        ),
        compiler_params=pltpu.CompilerParams(
            dimension_semantics=("parallel",),
            vmem_limit_bytes=int(vmem_budget),
        ),
    )


# --------------------------------------------------------------------------- #
# Public API
# --------------------------------------------------------------------------- #
def prepare_converter_params(gamma, beta, w1, b1, w2, b2):
    """One-time parameter preprocessing (do NOT run per forward call).

    Folds LayerNorm gamma into the weight rows and beta into the bias:
        (xhat*gamma + beta) @ W + b  ==  xhat @ (gamma[:,None]*W) + (beta @ W + b)
    Stacks fc1/fc2 into one (2, N, N) weight, cast to bf16 once; biases (2, 1, N) f32.
    """
    n = gamma.shape[-1]
    w12 = jnp.stack([w1, w2], axis=0).astype(jnp.float32)                # (2, N, N)
    b12 = jnp.stack([b1, b2], axis=0).astype(jnp.float32)                # (2, N)
    g = gamma.astype(jnp.float32)
    bt = beta.astype(jnp.float32)
    wq = (g[None, :, None] * w12).astype(jnp.bfloat16)                   # gamma folded
    bq = (jnp.einsum("n,knm->km", bt, w12) + b12).reshape(2, 1, n)       # beta folded
    return wq, bq


def simple_embedding_converter(x, wq, bq, *, approximate_gelu=False):
    """x: (..., N) float32; wq/bq from prepare_converter_params.
    Returns fc1(ln(x)) * gelu(fc2(ln(x)))."""
    shape = x.shape
    n = shape[-1]
    m = 1
    for d in shape[:-1]:
        m *= d
    x2 = x.reshape(m, n)

    vmem_budget, num_tc = _device_caps()
    tm = _pick_tm(m, n, vmem_budget, num_tc)
    kernel = functools.partial(_converter_kernel, approximate_gelu=approximate_gelu)

    args = (x2, wq, bq)
    try:
        out = _build_call(kernel, m, n, tm, x.dtype, vmem_budget, True)(*args)
    except Exception:
        # pipeline_mode=pl.Buffered(1) rejected by this jax/Mosaic build: fall
        # back to default double-buffered constant blocks (still correct).
        out = _build_call(kernel, m, n, tm, x.dtype, vmem_budget, False)(*args)

    return out.reshape(shape)


# --------------------------------------------------------------------------- #
# References (for validation only)
# --------------------------------------------------------------------------- #
def _reference_f32(x, gamma, beta, w1, b1, w2, b2):
    """Pure-f32 reference matching the PyTorch module semantics."""
    mean = jnp.mean(x, axis=-1, keepdims=True)
    var = jnp.mean((x - mean) ** 2, axis=-1, keepdims=True)
    xn = (x - mean) * lax.rsqrt(var + 1e-5) * gamma + beta
    y1 = xn @ w1 + b1
    y2 = xn @ w2 + b2
    y2 = 0.5 * y2 * (1.0 + lax.erf(y2 / jnp.sqrt(2.0)))
    return y1 * y2


def _reference_kernel_math(x, gamma, beta, w1, b1, w2, b2):
    """Reference mirroring the kernel's folded bf16-input / f32-accumulate math."""
    mean = jnp.mean(x, axis=-1, keepdims=True)
    var = jnp.mean((x - mean) ** 2, axis=-1, keepdims=True)
    xh = ((x - mean) * lax.rsqrt(var + 1e-5)).astype(jnp.bfloat16)
    wq1 = (gamma[:, None] * w1).astype(jnp.bfloat16)
    wq2 = (gamma[:, None] * w2).astype(jnp.bfloat16)
    bb1 = beta @ w1 + b1
    bb2 = beta @ w2 + b2
    y1 = jnp.dot(xh, wq1, preferred_element_type=jnp.float32) + bb1
    y2 = jnp.dot(xh, wq2, preferred_element_type=jnp.float32) + bb2
    y2 = 0.5 * y2 * (1.0 + lax.erf(y2 / jnp.sqrt(2.0)))
    return y1 * y2


# --------------------------------------------------------------------------- #
# Demo / self-test
# --------------------------------------------------------------------------- #
if __name__ == "__main__":
    B, S, N = 2, 8, 256  # small stand-in for the module's default n=1024

    key = jax.random.PRNGKey(0)
    kx, kg, kb, kw1, kb1, kw2, kb2 = jax.random.split(key, 7)

    x = jax.random.normal(kx, (B, S, N), dtype=jnp.float32)

    # Deterministic synthetic parameters (shapes follow the module's __init__).
    gamma = 1.0 + 0.01 * jax.random.normal(kg, (N,), dtype=jnp.float32)
    beta = 0.01 * jax.random.normal(kb, (N,), dtype=jnp.float32)
    w1 = jax.random.normal(kw1, (N, N), dtype=jnp.float32) / jnp.sqrt(N)
    b1 = 0.01 * jax.random.normal(kb1, (N,), dtype=jnp.float32)
    w2 = jax.random.normal(kw2, (N, N), dtype=jnp.float32) / jnp.sqrt(N)
    b2 = 0.01 * jax.random.normal(kb2, (N,), dtype=jnp.float32)

    # One-time preprocessing, off the per-call path.
    wq, bq = jax.block_until_ready(
        prepare_converter_params(gamma, beta, w1, b1, w2, b2))

    out = simple_embedding_converter(x, wq, bq)
    out = jax.block_until_ready(out)
    assert out.shape == (B, S, N)

    # Tight check vs. a reference that mirrors the kernel's bf16/folded math.
    ref_k = _reference_kernel_math(x, gamma, beta, w1, b1, w2, b2)
    assert jnp.allclose(out, ref_k, atol=3e-3, rtol=3e-3), \
        "mismatch vs bf16-matmul (folded) reference"

    # Loose check vs. the pure-f32 module semantics (bf16 MXU inputs lose ~8 mantissa bits).
    ref_f = _reference_f32(x, gamma, beta, w1, b1, w2, b2)
    assert jnp.allclose(out, ref_f, atol=5e-2, rtol=5e-2), \
        "mismatch vs f32 reference"

    print("KERNEL_OK")
</pallas_src>

<mosaic_0001>
module attributes {stable_mosaic.version = 11 : i64} {
  func.func @_converter_kernel(%arg0: i32, %arg1: memref<16x256xf32, #tpu.memory_space<vmem>>, %arg2: memref<2x256x256xbf16, #tpu.memory_space<vmem>>, %arg3: memref<2x1x256xf32, #tpu.memory_space<vmem>>, %arg4: memref<16x256xf32, #tpu.memory_space<vmem>>) attributes {dimension_semantics = [#tpu.dimension_semantics<parallel>], iteration_bounds = array<i64: 1>, scalar_prefetch = 0 : i64, scratch_operands = 0 : i64, tpu.core_type = #tpu.core_type<tc>, window_params = [{transform_indices = @transform_0, window_bounds = array<i64: 16, 256>}, {pipeline_mode = #tpu.pipeline_mode<synchronous>, transform_indices = @transform_1, window_bounds = array<i64: 2, 256, 256>}, {pipeline_mode = #tpu.pipeline_mode<synchronous>, transform_indices = @transform_2, window_bounds = array<i64: 2, 1, 256>}, {transform_indices = @transform_3, window_bounds = array<i64: 16, 256>}]} {
    %c0 = arith.constant 0 : index
    %c0_0 = arith.constant 0 : index
    %0 = vector.load %arg1[%c0, %c0_0] : memref<16x256xf32, #tpu.memory_space<vmem>>, vector<16x256xf32>
    %cst = arith.constant dense<0.000000e+00> : vector<16xf32>
    %1 = vector.multi_reduction <add>, %0, %cst [1] : vector<16x256xf32> to vector<16xf32>
    %2 = vector.shape_cast %1 : vector<16xf32> to vector<16x1xf32>
    %cst_1 = arith.constant 2.560000e+02 : f32
    %3 = vector.broadcast %cst_1 : f32 to vector<16x1xf32>
    %4 = arith.divf %2, %3 : vector<16x1xf32>
    %5 = vector.broadcast %4 : vector<16x1xf32> to vector<16x256xf32>
    %6 = arith.subf %0, %5 : vector<16x256xf32>
    %7 = arith.mulf %6, %6 : vector<16x256xf32>
    %cst_2 = arith.constant dense<0.000000e+00> : vector<16xf32>
    %8 = vector.multi_reduction <add>, %7, %cst_2 [1] : vector<16x256xf32> to vector<16xf32>
    %9 = vector.shape_cast %8 : vector<16xf32> to vector<16x1xf32>
    %cst_3 = arith.constant 2.560000e+02 : f32
    %10 = vector.broadcast %cst_3 : f32 to vector<16x1xf32>
    %11 = arith.divf %9, %10 : vector<16x1xf32>
    %cst_4 = arith.constant 9.99999974E-6 : f32
    %12 = vector.broadcast %cst_4 : f32 to vector<16x1xf32>
    %13 = arith.addf %11, %12 : vector<16x1xf32>
    %14 = math.rsqrt %13 : vector<16x1xf32>
    %15 = vector.broadcast %14 : vector<16x1xf32> to vector<16x256xf32>
    %16 = arith.mulf %6, %15 : vector<16x256xf32>
    %17 = arith.truncf %16 : vector<16x256xf32> to vector<16x256xbf16>
    %c0_5 = arith.constant 0 : index
    %c0_6 = arith.constant 0 : index
    %c0_7 = arith.constant 0 : index
    %18 = vector.load %arg2[%c0_5, %c0_6, %c0_7] : memref<2x256x256xbf16, #tpu.memory_space<vmem>>, vector<1x256x256xbf16>
    %19 = vector.shape_cast %18 : vector<1x256x256xbf16> to vector<256x256xbf16>
    %cst_8 = arith.constant dense<0.000000e+00> : vector<16x256xf32>
    %20 = tpu.matmul %17, %19, %cst_8 {dimension_numbers = #tpu.dot_dimension_numbers<[1], [0], [0], [1], [0, 0, 1, 1], [], []>} : vector<16x256xbf16>, vector<256x256xbf16>, vector<16x256xf32> -> vector<16x256xf32>
    %c0_9 = arith.constant 0 : index
    %c0_10 = arith.constant 0 : index
    %c0_11 = arith.constant 0 : index
    %21 = vector.load %arg3[%c0_9, %c0_10, %c0_11] : memref<2x1x256xf32, #tpu.memory_space<vmem>>, vector<1x1x256xf32>
    %22 = vector.shape_cast %21 : vector<1x1x256xf32> to vector<1x256xf32>
    %23 = vector.broadcast %22 : vector<1x256xf32> to vector<16x256xf32>
    %24 = arith.addf %20, %23 : vector<16x256xf32>
    %c1 = arith.constant 1 : index
    %c0_12 = arith.constant 0 : index
    %c0_13 = arith.constant 0 : index
    %25 = vector.load %arg2[%c1, %c0_12, %c0_13] : memref<2x256x256xbf16, #tpu.memory_space<vmem>>, vector<1x256x256xbf16>
    %26 = vector.shape_cast %25 : vector<1x256x256xbf16> to vector<256x256xbf16>
    %cst_14 = arith.constant dense<0.000000e+00> : vector<16x256xf32>
    %27 = tpu.matmul %17, %26, %cst_14 {dimension_numbers = #tpu.dot_dimension_numbers<[1], [0], [0], [1], [0, 0, 1, 1], [], []>} : vector<16x256xbf16>, vector<256x256xbf16>, vector<16x256xf32> -> vector<16x256xf32>
    %c1_15 = arith.constant 1 : index
    %c0_16 = arith.constant 0 : index
    %c0_17 = arith.constant 0 : index
    %28 = vector.load %arg3[%c1_15, %c0_16, %c0_17] : memref<2x1x256xf32, #tpu.memory_space<vmem>>, vector<1x1x256xf32>
    %29 = vector.shape_cast %28 : vector<1x1x256xf32> to vector<1x256xf32>
    %30 = vector.broadcast %29 : vector<1x256xf32> to vector<16x256xf32>
    %31 = arith.addf %27, %30 : vector<16x256xf32>
    %cst_18 = arith.constant 5.000000e-01 : f32
    %32 = vector.broadcast %cst_18 : f32 to vector<16x256xf32>
    %33 = arith.mulf %32, %31 : vector<16x256xf32>
    %cst_19 = arith.constant 0.707106769 : f32
    %34 = vector.broadcast %cst_19 : f32 to vector<16x256xf32>
    %35 = arith.mulf %31, %34 : vector<16x256xf32>
    %36 = math.erf %35 : vector<16x256xf32>
    %cst_20 = arith.constant 1.000000e+00 : f32
    %37 = vector.broadcast %cst_20 : f32 to vector<16x256xf32>
    %38 = arith.addf %37, %36 : vector<16x256xf32>
    %39 = arith.mulf %33, %38 : vector<16x256xf32>
    %40 = arith.mulf %24, %39 : vector<16x256xf32>
    %c0_21 = arith.constant 0 : index
    %c0_22 = arith.constant 0 : index
    %41 = vector.load %arg4[%c0_21, %c0_22] : memref<16x256xf32, #tpu.memory_space<vmem>>, vector<16x256xf32>
    tpu.vector_store %arg4[%c0_21, %c0_22], %40 {strides = array<i32>} : memref<16x256xf32, #tpu.memory_space<vmem>>, vector<16x256xf32>,
    return
  }
  func.func @transform_0(%arg0: i32) -> (i32, i32) {
    %c0_i32 = arith.constant 0 : i32
    %c0_i32_0 = arith.constant 0 : i32
    return %arg0, %c0_i32 : i32, i32
  }
  func.func @transform_1(%arg0: i32) -> (i32, i32, i32) {
    %c0_i32 = arith.constant 0 : i32
    %c0_i32_0 = arith.constant 0 : i32
    %c0_i32_1 = arith.constant 0 : i32
    %c0_i32_2 = arith.constant 0 : i32
    return %c0_i32, %c0_i32_0, %c0_i32_1 : i32, i32, i32
  }
  func.func @transform_2(%arg0: i32) -> (i32, i32, i32) {
    %c0_i32 = arith.constant 0 : i32
    %c0_i32_0 = arith.constant 0 : i32
    %c0_i32_1 = arith.constant 0 : i32
    %c0_i32_2 = arith.constant 0 : i32
    return %c0_i32, %c0_i32_0, %c0_i32_1 : i32, i32, i32
  }
  func.func @transform_3(%arg0: i32) -> (i32, i32) {
    %c0_i32 = arith.constant 0 : i32
    %c0_i32_0 = arith.constant 0 : i32
    return %arg0, %c0_i32 : i32, i32
  }
}

module attributes {stable_mosaic.version = 11 : i64} {
  func.func @_converter_kernel(%arg0: i32, %arg1: memref<16x256xf32, #tpu.memory_space<vmem>>, %arg2: memref<2x256x256xbf16, #tpu.memory_space<vmem>>, %arg3: memref<2x1x256xf32, #tpu.memory_space<vmem>>, %arg4: memref<16x256xf32, #tpu.memory_space<vmem>>) attributes {dimension_semantics = [#tpu.dimension_semantics<parallel>], iteration_bounds = array<i64: 1>, scalar_prefetch = 0 : i64, scratch_operands = 0 : i64, tpu.core_type = #tpu.core_type<tc>, window_params = [{transform_indices = @transform_0, window_bounds = array<i64: 16, 256>}, {pipeline_mode = #tpu.pipeline_mode<synchronous>, transform_indices = @transform_1, window_bounds = array<i64: 2, 256, 256>}, {pipeline_mode = #tpu.pipeline_mode<synchronous>, transform_indices = @transform_2, window_bounds = array<i64: 2, 1, 256>}, {transform_indices = @transform_3, window_bounds = array<i64: 16, 256>}]} {
    %c0 = arith.constant 0 : index
    %c0_0 = arith.constant 0 : index
    %0 = vector.load %arg1[%c0, %c0_0] : memref<16x256xf32, #tpu.memory_space<vmem>>, vector<16x256xf32>
    %cst = arith.constant dense<0.000000e+00> : vector<16xf32>
    %1 = vector.multi_reduction <add>, %0, %cst [1] : vector<16x256xf32> to vector<16xf32>
    %2 = vector.shape_cast %1 : vector<16xf32> to vector<16x1xf32>
    %cst_1 = arith.constant 2.560000e+02 : f32
    %3 = vector.broadcast %cst_1 : f32 to vector<16x1xf32>
    %4 = arith.divf %2, %3 : vector<16x1xf32>
    %5 = vector.broadcast %4 : vector<16x1xf32> to vector<16x256xf32>
    %6 = arith.subf %0, %5 : vector<16x256xf32>
    %7 = arith.mulf %6, %6 : vector<16x256xf32>
    %cst_2 = arith.constant dense<0.000000e+00> : vector<16xf32>
    %8 = vector.multi_reduction <add>, %7, %cst_2 [1] : vector<16x256xf32> to vector<16xf32>
    %9 = vector.shape_cast %8 : vector<16xf32> to vector<16x1xf32>
    %cst_3 = arith.constant 2.560000e+02 : f32
    %10 = vector.broadcast %cst_3 : f32 to vector<16x1xf32>
    %11 = arith.divf %9, %10 : vector<16x1xf32>
    %cst_4 = arith.constant 9.99999974E-6 : f32
    %12 = vector.broadcast %cst_4 : f32 to vector<16x1xf32>
    %13 = arith.addf %11, %12 : vector<16x1xf32>
    %14 = math.rsqrt %13 : vector<16x1xf32>
    %15 = vector.broadcast %14 : vector<16x1xf32> to vector<16x256xf32>
    %16 = arith.mulf %6, %15 : vector<16x256xf32>
    %17 = arith.truncf %16 : vector<16x256xf32> to vector<16x256xbf16>
    %c0_5 = arith.constant 0 : index
    %c0_6 = arith.constant 0 : index
    %c0_7 = arith.constant 0 : index
    %18 = vector.load %arg2[%c0_5, %c0_6, %c0_7] : memref<2x256x256xbf16, #tpu.memory_space<vmem>>, vector<1x256x256xbf16>
    %19 = vector.shape_cast %18 : vector<1x256x256xbf16> to vector<256x256xbf16>
    %cst_8 = arith.constant dense<0.000000e+00> : vector<16x256xf32>
    %20 = tpu.matmul %17, %19, %cst_8 {dimension_numbers = #tpu.dot_dimension_numbers<[1], [0], [0], [1], [0, 0, 1, 1], [], []>} : vector<16x256xbf16>, vector<256x256xbf16>, vector<16x256xf32> -> vector<16x256xf32>
    %c0_9 = arith.constant 0 : index
    %c0_10 = arith.constant 0 : index
    %c0_11 = arith.constant 0 : index
    %21 = vector.load %arg3[%c0_9, %c0_10, %c0_11] : memref<2x1x256xf32, #tpu.memory_space<vmem>>, vector<1x1x256xf32>
    %22 = vector.shape_cast %21 : vector<1x1x256xf32> to vector<1x256xf32>
    %23 = vector.broadcast %22 : vector<1x256xf32> to vector<16x256xf32>
    %24 = arith.addf %20, %23 : vector<16x256xf32>
    %c1 = arith.constant 1 : index
    %c0_12 = arith.constant 0 : index
    %c0_13 = arith.constant 0 : index
    %25 = vector.load %arg2[%c1, %c0_12, %c0_13] : memref<2x256x256xbf16, #tpu.memory_space<vmem>>, vector<1x256x256xbf16>
    %26 = vector.shape_cast %25 : vector<1x256x256xbf16> to vector<256x256xbf16>
    %cst_14 = arith.constant dense<0.000000e+00> : vector<16x256xf32>
    %27 = tpu.matmul %17, %26, %cst_14 {dimension_numbers = #tpu.dot_dimension_numbers<[1], [0], [0], [1], [0, 0, 1, 1], [], []>} : vector<16x256xbf16>, vector<256x256xbf16>, vector<16x256xf32> -> vector<16x256xf32>
    %c1_15 = arith.constant 1 : index
    %c0_16 = arith.constant 0 : index
    %c0_17 = arith.constant 0 : index
    %28 = vector.load %arg3[%c1_15, %c0_16, %c0_17] : memref<2x1x256xf32, #tpu.memory_space<vmem>>, vector<1x1x256xf32>
    %29 = vector.shape_cast %28 : vector<1x1x256xf32> to vector<1x256xf32>
    %30 = vector.broadcast %29 : vector<1x256xf32> to vector<16x256xf32>
    %31 = arith.addf %27, %30 : vector<16x256xf32>
    %cst_18 = arith.constant 5.000000e-01 : f32
    %32 = vector.broadcast %cst_18 : f32 to vector<16x256xf32>
    %33 = arith.mulf %32, %31 : vector<16x256xf32>
    %cst_19 = arith.constant 0.707106769 : f32
    %34 = vector.broadcast %cst_19 : f32 to vector<16x256xf32>
    %35 = arith.mulf %31, %34 : vector<16x256xf32>
    %36 = math.erf %35 : vector<16x256xf32>
    %cst_20 = arith.constant 1.000000e+00 : f32
    %37 = vector.broadcast %cst_20 : f32 to vector<16x256xf32>
    %38 = arith.addf %37, %36 : vector<16x256xf32>
    %39 = arith.mulf %33, %38 : vector<16x256xf32>
    %40 = arith.mulf %24, %39 : vector<16x256xf32>
    %c0_21 = arith.constant 0 : index
    %c0_22 = arith.constant 0 : index
    %41 = vector.load %arg4[%c0_21, %c0_22] : memref<16x256xf32, #tpu.memory_space<vmem>>, vector<16x256xf32>
    tpu.vector_store %arg4[%c0_21, %c0_22], %40 {strides = array<i32>} : memref<16x256xf32, #tpu.memory_space<vmem>>, vector<16x256xf32>,
    return
  }
  func.func @transform_0(%arg0: i32) -> (i32, i32) {
    %c0_i32 = arith.constant 0 : i32
    %c0_i32_0 = arith.constant 0 : i32
    return %arg0, %c0_i32 : i32, i32
  }
  func.func @transform_1(%arg0: i32) -> (i32, i32, i32) {
    %c0_i32 = arith.constant 0 : i32
    %c0_i32_0 = arith.constant 0 : i32
    %c0_i32_1 = arith.constant 0 : i32
    %c0_i32_2 = arith.constant 0 : i32
    return %c0_i32, %c0_i32_0, %c0_i32_1 : i32, i32, i32
  }
  func.func @transform_2(%arg0: i32) -> (i32, i32, i32) {
    %c0_i32 = arith.constant 0 : i32
    %c0_i32_0 = arith.constant 0 : i32
    %c0_i32_1 = arith.constant 0 : i32
    %c0_i32_2 = arith.constant 0 : i32
    return %c0_i32, %c0_i32_0, %c0_i32_1 : i32, i32, i32
  }
  func.func @transform_3(%arg0: i32) -> (i32, i32) {
    %c0_i32 = arith.constant 0 : i32
    %c0_i32_0 = arith.constant 0 : i32
    return %arg0, %c0_i32 : i32, i32
  }
}

</mosaic_0001>

<llo_original>
// kernel: tpu_custom_call.1
$region0: #{tpu_custom_call.1}
  #allocation0 [shape = 'u32[]', space=smem, size = 0x4, offset = 0x4, fixed_abs, tag = 'smem constant byte address 0x4 - core index']
  #allocation1 [shape = 'u32[144,128]{1,0:T(1,128)}', space=vmem, size = 0x12000, scoped, tag = 'internal scratch']
  %s0 = inlined_call_operand.hbm [shape: f32[16,256], index: 0, kind: input, shape index: {}]
  %s1 = inlined_call_operand.hbm [shape: bf16[2,256,256], index: 1, kind: input, shape index: {}]
  %s2 = inlined_call_operand.vmem [shape: f32[2,1,256], index: 2, kind: input, shape index: {}]
  %s3 = inlined_call_operand.hbm [shape: f32[16,256], index: 3, kind: output, shape index: {}]
  %s4 = sld [smem:[#allocation0]]
  $region30: #{tpu_custom_call.1} parent=0
    _
  %s6 = ssub.s32 1, %s4
  %s7 = scalar_select 0, %s6, %s4
  $region1: #{tpu_custom_call.1} parent=0
    #allocation2 [shape = 'u8[16384]{0}', space=vmem, size = 0x4000, scoped, tag = 'input window, operand 0, single buffered']
    #allocation3 [shape = 's32[1]{0}', space=sflag, size = 0x4, scoped, tag = 'scoped memory for tpu_custom_call.1']
    #allocation4 [shape = 's32[1]{0}', space=sflag, size = 0x4, scoped, tag = 'scoped memory for tpu_custom_call.1']
    #allocation5 [shape = 'u8[262144]{0}', space=vmem, size = 0x40000, scoped, tag = 'input window, operand 1, single buffered']
    #allocation6 [shape = 's32[1]{0}', space=sflag, size = 0x4, scoped, tag = 'scoped memory for tpu_custom_call.1']
    #allocation7 [shape = 'u8[16384]{0}', space=vmem, size = 0x4000, scoped, tag = 'output window, operand 0, single buffered']
    %8 = vsyncpa [#allocation3], 0
    %9 = vsyncpa [#allocation6], 0
    %10 = vsyncpa [#allocation4], 0
    // Predicated region
    $region2: #{tpu_custom_call.1} parent=1 // pred_check
      _
    $region3: #{tpu_custom_call.1} parent=1 // pred_check_branch
      %12 = sbr.rel (0) target = $region5
    $region4: #{tpu_custom_call.1} parent=1 // pred_region
      %s14 = ssub.s32 512, 512
      %15 = vsyncadd [#allocation3], %s14
      %s16 = sshll.u32 [#allocation2], 4
      %s17 = int_to_ptr.vmem [resolvable:$true] %s16
      %22 = dma.hbm_to_vmem [thread:$0]  %s0, 512, %s17, [#allocation3], 256, 256, 16
    $region5: #{tpu_custom_call.1} parent=1 // pred_fallthru
      _
    // Predicated region
    $region6: #{tpu_custom_call.1} parent=1 // pred_check
      _
    $region7: #{tpu_custom_call.1} parent=1 // pred_check_branch
      %24 = sbr.rel (0) target = $region9
    $region8: #{tpu_custom_call.1} parent=1 // pred_region
      %s26 = ssub.s32 8192, 8192
      %27 = vsyncadd [#allocation6], %s26
      %s28 = sshll.u32 [#allocation5], 4
      %s29 = int_to_ptr.vmem [resolvable:$true] %s28
      %34 = dma.hbm_to_vmem [thread:$0]  %s1, 8192, %s29, [#allocation6], 128, 128, 8
    $region9: #{tpu_custom_call.1} parent=1 // pred_fallthru
      _
    // Predicated region
    $region10: #{tpu_custom_call.1} parent=1 // pred_check
      _
    $region11: #{tpu_custom_call.1} parent=1 // pred_check_branch
      %36 = sbr.rel (0) target = $region13
    $region12: #{tpu_custom_call.1} parent=1 // pred_region
      _
    $region13: #{tpu_custom_call.1} parent=1 // pred_fallthru
      _
    // Predicated region
    $region14: #{tpu_custom_call.1} parent=1 // pred_check
      _
    $region15: #{tpu_custom_call.1} parent=1 // pred_check_branch
      %38 = sbr.rel (0) target = $region17
    $region16: #{tpu_custom_call.1} parent=1 // pred_region
      %39 = dma.done [#allocation3], 512
    $region17: #{tpu_custom_call.1} parent=1 // pred_fallthru
      _
    // Predicated region
    $region18: #{tpu_custom_call.1} parent=1 // pred_check
      _
    $region19: #{tpu_custom_call.1} parent=1 // pred_check_branch
      %41 = sbr.rel (0) target = $region21
    $region20: #{tpu_custom_call.1} parent=1 // pred_region
      %42 = dma.done [#allocation6], 8192
    $region21: #{tpu_custom_call.1} parent=1 // pred_fallthru
      _
    %v43 = vld [vmem:[#allocation2] sm:$0xff]
    %v44 = vld [vmem:[#allocation2 + $0x8] sm:$0xff]
    %v45 = vld [vmem:[#allocation2 + $0x10] sm:$0xff]
    %v46 = vld [vmem:[#allocation2 + $0x18] sm:$0xff]
    %v47 = vadd.f32 %v43, %v44
    %48 = vadd.xlane.f32.xlu0 %v47
    %v49 = vpop.xlane.xlu0 %48
    %v50 = vadd.f32 %v45, %v46
    %51 = vadd.xlane.f32.xlu0 %v50
    %v52 = vpop.xlane.xlu0 %51
    %v53 = vrcp.pop 256.0
    %v54 = vmul.f32 %v49, %v53
    %v55 = vmul.f32 %v52, %v53
    %v56 = vsub.f32 %v43, %v54
    %v57 = vsub.f32 %v44, %v54
    %v58 = vsub.f32 %v45, %v55
    %v59 = vsub.f32 %v46, %v55
    %v60 = vmul.f32 %v56, %v56
    %v61 = vmul.f32 %v57, %v57
    %v62 = vmul.f32 %v58, %v58
    %v63 = vmul.f32 %v59, %v59
    %v64 = vadd.f32 %v60, %v61
    %65 = vadd.xlane.f32.xlu0 %v64
    %v66 = vpop.xlane.xlu0 %65
    %v67 = vadd.f32 %v62, %v63
    %68 = vadd.xlane.f32.xlu0 %v67
    %v69 = vpop.xlane.xlu0 %68
    %v70 = vmul.f32 %v66, %v53
    %v71 = vmul.f32 %v69, %v53
    %v72 = vadd.f32 %v70, 1e-05
    %v73 = vadd.f32 %v71, 1e-05
    %v74 = vrsqrt.pop %v72
    %v75 = vrsqrt.pop %v73
    %v76 = vmul.f32 %v56, %v74
    %v77 = vmul.f32 %v57, %v74
    %v78 = vmul.f32 %v58, %v75
    %v79 = vmul.f32 %v59, %v75
    %v80 = vpack.c.bf16 %v78, %v76
    %v81 = vpack.c.bf16 %v79, %v77
    %v82 = vld [vmem:[#allocation5] sm:$0xff]
    %v83 = vld [vmem:[#allocation5 + $0x8] sm:$0xff]
    %v84 = vld [vmem:[#allocation5 + $0x10] sm:$0xff]
    %v85 = vld [vmem:[#allocation5 + $0x18] sm:$0xff]
    %v86 = vld [vmem:[#allocation5 + $0x20] sm:$0xff]
    %v87 = vld [vmem:[#allocation5 + $0x28] sm:$0xff]
    %v88 = vld [vmem:[#allocation5 + $0x30] sm:$0xff]
    %v89 = vld [vmem:[#allocation5 + $0x38] sm:$0xff]
    %v90 = vld [vmem:[#allocation5 + $0x40] sm:$0xff]
    %v91 = vld [vmem:[#allocation5 + $0x48] sm:$0xff]
    %v92 = vld [vmem:[#allocation5 + $0x50] sm:$0xff]
    %v93 = vld [vmem:[#allocation5 + $0x58] sm:$0xff]
    %v94 = vld [vmem:[#allocation5 + $0x60] sm:$0xff]
    %v95 = vld [vmem:[#allocation5 + $0x68] sm:$0xff]
    %v96 = vld [vmem:[#allocation5 + $0x70] sm:$0xff]
    %v97 = vld [vmem:[#allocation5 + $0x78] sm:$0xff]
    %v98 = vld [vmem:[#allocation5 + $0x80] sm:$0xff]
    %v99 = vld [vmem:[#allocation5 + $0x88] sm:$0xff]
    %v100 = vld [vmem:[#allocation5 + $0x90] sm:$0xff]
    %v101 = vld [vmem:[#allocation5 + $0x98] sm:$0xff]
    %v102 = vld [vmem:[#allocation5 + $0xa0] sm:$0xff]
    %v103 = vld [vmem:[#allocation5 + $0xa8] sm:$0xff]
    %v104 = vld [vmem:[#allocation5 + $0xb0] sm:$0xff]
    %v105 = vld [vmem:[#allocation5 + $0xb8] sm:$0xff]
    %v106 = vld [vmem:[#allocation5 + $0xc0] sm:$0xff]
    %v107 = vld [vmem:[#allocation5 + $0xc8] sm:$0xff]
    %v108 = vld [vmem:[#allocation5 + $0xd0] sm:$0xff]
    %v109 = vld [vmem:[#allocation5 + $0xd8] sm:$0xff]
    %v110 = vld [vmem:[#allocation5 + $0xe0] sm:$0xff]
    %v111 = vld [vmem:[#allocation5 + $0xe8] sm:$0xff]
    %v112 = vld [vmem:[#allocation5 + $0xf0] sm:$0xff]
    %v113 = vld [vmem:[#allocation5 + $0xf8] sm:$0xff]
    %v114 = vld [vmem:[%s2] sm:$0x3]
    %v116 = vlaneseq
    %v117 = vshrl.u32 %v116, 7
    %v118 = vsub.s32 0, %v117
    %v119 = vrot.slane %v114, %v118
    %v120 = vlaneseq
    %v121 = vshrl.u32 %v120, 7
    %v122 = vsub.s32 1, %v121
    %v123 = vrot.slane %v114, %v122
    %v158 = vunpack.c.l.b16 %v82
    %v159 = vunpack.c.h.b16 %v82
    %v160 = vunpack.c.l.b16 %v83
    %v161 = vunpack.c.h.b16 %v83
    %v162 = vunpack.c.l.b16 %v84
    %v163 = vunpack.c.h.b16 %v84
    %v164 = vunpack.c.l.b16 %v85
    %v165 = vunpack.c.h.b16 %v85
    %v166 = vunpack.c.l.b16 %v86
    %v167 = vunpack.c.h.b16 %v86
    %v168 = vunpack.c.l.b16 %v87
    %v169 = vunpack.c.h.b16 %v87
    %v170 = vunpack.c.l.b16 %v88
    %v171 = vunpack.c.h.b16 %v88
    %v172 = vunpack.c.l.b16 %v89
    %v173 = vunpack.c.h.b16 %v89
    %v174 = vunpack.c.l.b16 %v90
    %v175 = vunpack.c.h.b16 %v90
    %v176 = vunpack.c.l.b16 %v91
    %v177 = vunpack.c.h.b16 %v91
    %v178 = vunpack.c.l.b16 %v92
    %v179 = vunpack.c.h.b16 %v92
    %v180 = vunpack.c.l.b16 %v93
    %v181 = vunpack.c.h.b16 %v93
    %v182 = vunpack.c.l.b16 %v94
    %v183 = vunpack.c.h.b16 %v94
    %v184 = vunpack.c.l.b16 %v95
    %v185 = vunpack.c.h.b16 %v95
    %v186 = vunpack.c.l.b16 %v96
    %v187 = vunpack.c.h.b16 %v96
    %v188 = vunpack.c.l.b16 %v97
    %v189 = vunpack.c.h.b16 %v97
    %v190 = vunpack.c.l.b16 %v98
    %v191 = vunpack.c.h.b16 %v98
    %v192 = vunpack.c.l.b16 %v99
    %v193 = vunpack.c.h.b16 %v99
    %v194 = vunpack.c.l.b16 %v100
    %v195 = vunpack.c.h.b16 %v100
    %v196 = vunpack.c.l.b16 %v101
    %v197 = vunpack.c.h.b16 %v101
    %v198 = vunpack.c.l.b16 %v102
    %v199 = vunpack.c.h.b16 %v102
    %v200 = vunpack.c.l.b16 %v103
    %v201 = vunpack.c.h.b16 %v103
    %v202 = vunpack.c.l.b16 %v104
    %v203 = vunpack.c.h.b16 %v104
    %v204 = vunpack.c.l.b16 %v105
    %v205 = vunpack.c.h.b16 %v105
    %v206 = vunpack.c.l.b16 %v106
    %v207 = vunpack.c.h.b16 %v106
    %v208 = vunpack.c.l.b16 %v107
    %v209 = vunpack.c.h.b16 %v107
    %v210 = vunpack.c.l.b16 %v108
    %v211 = vunpack.c.h.b16 %v108
    %v212 = vunpack.c.l.b16 %v109
    %v213 = vunpack.c.h.b16 %v109
    %v214 = vunpack.c.l.b16 %v110
    %v215 = vunpack.c.h.b16 %v110
    %v216 = vunpack.c.l.b16 %v111
    %v217 = vunpack.c.h.b16 %v111
    %v218 = vunpack.c.l.b16 %v112
    %v219 = vunpack.c.h.b16 %v112
    %v220 = vunpack.c.l.b16 %v113
    %v221 = vunpack.c.h.b16 %v113
    %v222 = vpack.c.b16 %v160, %v158
    %v223 = vpack.c.b16 %v161, %v159
    %v224 = vpack.c.b16 %v164, %v162
    %v225 = vpack.c.b16 %v165, %v163
    %v226 = vpack.c.b16 %v168, %v166
    %v227 = vpack.c.b16 %v169, %v167
    %v228 = vpack.c.b16 %v172, %v170
    %v229 = vpack.c.b16 %v173, %v171
    %v230 = vpack.c.b16 %v176, %v174
    %v231 = vpack.c.b16 %v177, %v175
    %v232 = vpack.c.b16 %v180, %v178
    %v233 = vpack.c.b16 %v181, %v179
    %v234 = vpack.c.b16 %v184, %v182
    %v235 = vpack.c.b16 %v185, %v183
    %v236 = vpack.c.b16 %v188, %v186
    %v237 = vpack.c.b16 %v189, %v187
    %v238 = vpack.c.b16 %v192, %v190
    %v239 = vpack.c.b16 %v193, %v191
    %v240 = vpack.c.b16 %v196, %v194
    %v241 = vpack.c.b16 %v197, %v195
    %v242 = vpack.c.b16 %v200, %v198
    %v243 = vpack.c.b16 %v201, %v199
    %v244 = vpack.c.b16 %v204, %v202
    %v245 = vpack.c.b16 %v205, %v203
    %v246 = vpack.c.b16 %v208, %v206
    %v247 = vpack.c.b16 %v209, %v207
    %v248 = vpack.c.b16 %v212, %v210
    %v249 = vpack.c.b16 %v213, %v211
    %v250 = vpack.c.b16 %v216, %v214
    %v251 = vpack.c.b16 %v217, %v215
    %v252 = vpack.c.b16 %v220, %v218
    %v253 = vpack.c.b16 %v221, %v219
    %286 = vmatprep.subr.bf16.mxu0 %v223
    %287 = vmatpush1.bf16.msra.mxu0 %v222
    %288 = vmatprep.subr.bf16.mxu0 %v225
    %289 = vmatpush1.bf16.msra.mxu0 %v224
    %290 = vmatprep.subr.bf16.mxu0 %v227
    %291 = vmatpush1.bf16.msra.mxu0 %v226
    %292 = vmatprep.subr.bf16.mxu0 %v229
    %293 = vmatpush1.bf16.msra.mxu0 %v228
    %294 = vmatprep.subr.bf16.mxu0 %v231
    %295 = vmatpush1.bf16.msra.mxu0 %v230
    %296 = vmatprep.subr.bf16.mxu0 %v233
    %297 = vmatpush1.bf16.msra.mxu0 %v232
    %298 = vmatprep.subr.bf16.mxu0 %v235
    %299 = vmatpush1.bf16.msra.mxu0 %v234
    %300 = vmatprep.subr.bf16.mxu0 %v237
    %301 = vmatpush1.bf16.msra.mxu0 %v236
    %302 = vmatprep.subr.bf16.mxu0 %v239
    %303 = vmatpush1.bf16.msra.mxu0 %v238
    %304 = vmatprep.subr.bf16.mxu0 %v241
    %305 = vmatpush1.bf16.msra.mxu0 %v240
    %306 = vmatprep.subr.bf16.mxu0 %v243
    %307 = vmatpush1.bf16.msra.mxu0 %v242
    %308 = vmatprep.subr.bf16.mxu0 %v245
    %309 = vmatpush1.bf16.msra.mxu0 %v244
    %310 = vmatprep.subr.bf16.mxu0 %v247
    %311 = vmatpush1.bf16.msra.mxu0 %v246
    %312 = vmatprep.subr.bf16.mxu0 %v249
    %313 = vmatpush1.bf16.msra.mxu0 %v248
    %314 = vmatprep.subr.bf16.mxu0 %v251
    %315 = vmatpush1.bf16.msra.mxu0 %v250
    %316 = vmatprep.subr.bf16.mxu0 %v253
    %317 = vmatpush1.bf16.msra.mxu0 %v252
    %318 = vmatprep.mubr.bf16.mxu0 %v81
    %319 = vmatmul.mubr.bf16.gmra.mrb[0].mxu0 %v80
    %v320 = vpop.f32.mrb[0].mxu0
    %v321 = vadd.f32 %v119, %v320
    %v322 = vpop.f32.mrb[0].mxu0
    %v323 = vadd.f32 %v123, %v322
    %v324 = vpop.f32.mrb[0].mxu0
    %v325 = vadd.f32 %v119, %v324
    %v326 = vpop.f32.mrb[0].mxu0
    %v327 = vadd.f32 %v123, %v326
    %328 = vdwg.mxu0
    %s329 = scalar_lea.vmem [#allocation5], 256
    %v330 = vld [vmem:[%s329] sm:$0xff]
    %v331 = vld [vmem:[%s329 + $0x8] sm:$0xff]
    %v332 = vld [vmem:[%s329 + $0x10] sm:$0xff]
    %v333 = vld [vmem:[%s329 + $0x18] sm:$0xff]
    %v334 = vld [vmem:[%s329 + $0x20] sm:$0xff]
    %v335 = vld [vmem:[%s329 + $0x28] sm:$0xff]
    %v336 = vld [vmem:[%s329 + $0x30] sm:$0xff]
    %v337 = vld [vmem:[%s329 + $0x38] sm:$0xff]
    %v338 = vld [vmem:[%s329 + $0x40] sm:$0xff]
    %v339 = vld [vmem:[%s329 + $0x48] sm:$0xff]
    %v340 = vld [vmem:[%s329 + $0x50] sm:$0xff]
    %v341 = vld [vmem:[%s329 + $0x58] sm:$0xff]
    %v342 = vld [vmem:[%s329 + $0x60] sm:$0xff]
    %v343 = vld [vmem:[%s329 + $0x68] sm:$0xff]
    %v344 = vld [vmem:[%s329 + $0x70] sm:$0xff]
    %v345 = vld [vmem:[%s329 + $0x78] sm:$0xff]
    %v346 = vld [vmem:[%s329 + $0x80] sm:$0xff]
    %v347 = vld [vmem:[%s329 + $0x88] sm:$0xff]
    %v348 = vld [vmem:[%s329 + $0x90] sm:$0xff]
    %v349 = vld [vmem:[%s329 + $0x98] sm:$0xff]
    %v350 = vld [vmem:[%s329 + $0xa0] sm:$0xff]
    %v351 = vld [vmem:[%s329 + $0xa8] sm:$0xff]
    %v352 = vld [vmem:[%s329 + $0xb0] sm:$0xff]
    %v353 = vld [vmem:[%s329 + $0xb8] sm:$0xff]
    %v354 = vld [vmem:[%s329 + $0xc0] sm:$0xff]
    %v355 = vld [vmem:[%s329 + $0xc8] sm:$0xff]
    %v356 = vld [vmem:[%s329 + $0xd0] sm:$0xff]
    %v357 = vld [vmem:[%s329 + $0xd8] sm:$0xff]
    %v358 = vld [vmem:[%s329 + $0xe0] sm:$0xff]
    %v359 = vld [vmem:[%s329 + $0xe8] sm:$0xff]
    %v360 = vld [vmem:[%s329 + $0xf0] sm:$0xff]
    %v361 = vld [vmem:[%s329 + $0xf8] sm:$0xff]
    %s362 = scalar_lea.vmem %s2, 2
    %v363 = vld [vmem:[%s362] sm:$0x3]
    %v365 = vlaneseq
    %v366 = vshrl.u32 %v365, 7
    %v367 = vsub.s32 0, %v366
    %v368 = vrot.slane %v363, %v367
    %v369 = vlaneseq
    %v370 = vshrl.u32 %v369, 7
    %v371 = vsub.s32 1, %v370
    %v372 = vrot.slane %v363, %v371
    %v407 = vunpack.c.l.b16 %v330
    %v408 = vunpack.c.h.b16 %v330
    %v409 = vunpack.c.l.b16 %v331
    %v410 = vunpack.c.h.b16 %v331
    %v411 = vunpack.c.l.b16 %v332
    %v412 = vunpack.c.h.b16 %v332
    %v413 = vunpack.c.l.b16 %v333
    %v414 = vunpack.c.h.b16 %v333
    %v415 = vunpack.c.l.b16 %v334
    %v416 = vunpack.c.h.b16 %v334
    %v417 = vunpack.c.l.b16 %v335
    %v418 = vunpack.c.h.b16 %v335
    %v419 = vunpack.c.l.b16 %v336
    %v420 = vunpack.c.h.b16 %v336
    %v421 = vunpack.c.l.b16 %v337
    %v422 = vunpack.c.h.b16 %v337
    %v423 = vunpack.c.l.b16 %v338
    %v424 = vunpack.c.h.b16 %v338
    %v425 = vunpack.c.l.b16 %v339
    %v426 = vunpack.c.h.b16 %v339
    %v427 = vunpack.c.l.b16 %v340
    %v428 = vunpack.c.h.b16 %v340
    %v429 = vunpack.c.l.b16 %v341
    %v430 = vunpack.c.h.b16 %v341
    %v431 = vunpack.c.l.b16 %v342
    %v432 = vunpack.c.h.b16 %v342
    %v433 = vunpack.c.l.b16 %v343
    %v434 = vunpack.c.h.b16 %v343
    %v435 = vunpack.c.l.b16 %v344
    %v436 = vunpack.c.h.b16 %v344
    %v437 = vunpack.c.l.b16 %v345
    %v438 = vunpack.c.h.b16 %v345
    %v439 = vunpack.c.l.b16 %v346
    %v440 = vunpack.c.h.b16 %v346
    %v441 = vunpack.c.l.b16 %v347
    %v442 = vunpack.c.h.b16 %v347
    %v443 = vunpack.c.l.b16 %v348
    %v444 = vunpack.c.h.b16 %v348
    %v445 = vunpack.c.l.b16 %v349
    %v446 = vunpack.c.h.b16 %v349
    %v447 = vunpack.c.l.b16 %v350
    %v448 = vunpack.c.h.b16 %v350
    %v449 = vunpack.c.l.b16 %v351
    %v450 = vunpack.c.h.b16 %v351
    %v451 = vunpack.c.l.b16 %v352
    %v452 = vunpack.c.h.b16 %v352
    %v453 = vunpack.c.l.b16 %v353
    %v454 = vunpack.c.h.b16 %v353
    %v455 = vunpack.c.l.b16 %v354
    %v456 = vunpack.c.h.b16 %v354
    %v457 = vunpack.c.l.b16 %v355
    %v458 = vunpack.c.h.b16 %v355
    %v459 = vunpack.c.l.b16 %v356
    %v460 = vunpack.c.h.b16 %v356
    %v461 = vunpack.c.l.b16 %v357
    %v462 = vunpack.c.h.b16 %v357
    %v463 = vunpack.c.l.b16 %v358
    %v464 = vunpack.c.h.b16 %v358
    %v465 = vunpack.c.l.b16 %v359
    %v466 = vunpack.c.h.b16 %v359
    %v467 = vunpack.c.l.b16 %v360
    %v468 = vunpack.c.h.b16 %v360
    %v469 = vunpack.c.l.b16 %v361
    %v470 = vunpack.c.h.b16 %v361
    %v471 = vpack.c.b16 %v409, %v407
    %v472 = vpack.c.b16 %v410, %v408
    %v473 = vpack.c.b16 %v413, %v411
    %v474 = vpack.c.b16 %v414, %v412
    %v475 = vpack.c.b16 %v417, %v415
    %v476 = vpack.c.b16 %v418, %v416
    %v477 = vpack.c.b16 %v421, %v419
    %v478 = vpack.c.b16 %v422, %v420
    %v479 = vpack.c.b16 %v425, %v423
    %v480 = vpack.c.b16 %v426, %v424
    %v481 = vpack.c.b16 %v429, %v427
    %v482 = vpack.c.b16 %v430, %v428
    %v483 = vpack.c.b16 %v433, %v431
    %v484 = vpack.c.b16 %v434, %v432
    %v485 = vpack.c.b16 %v437, %v435
    %v486 = vpack.c.b16 %v438, %v436
    %v487 = vpack.c.b16 %v441, %v439
    %v488 = vpack.c.b16 %v442, %v440
    %v489 = vpack.c.b16 %v445, %v443
    %v490 = vpack.c.b16 %v446, %v444
    %v491 = vpack.c.b16 %v449, %v447
    %v492 = vpack.c.b16 %v450, %v448
    %v493 = vpack.c.b16 %v453, %v451
    %v494 = vpack.c.b16 %v454, %v452
    %v495 = vpack.c.b16 %v457, %v455
    %v496 = vpack.c.b16 %v458, %v456
    %v497 = vpack.c.b16 %v461, %v459
    %v498 = vpack.c.b16 %v462, %v460
    %v499 = vpack.c.b16 %v465, %v463
    %v500 = vpack.c.b16 %v466, %v464
    %v501 = vpack.c.b16 %v469, %v467
    %v502 = vpack.c.b16 %v470, %v468
    %535 = vmatprep.subr.bf16.mxu0 %v472
    %536 = vmatpush1.bf16.msra.mxu0 %v471
    %537 = vmatprep.subr.bf16.mxu0 %v474
    %538 = vmatpush1.bf16.msra.mxu0 %v473
    %539 = vmatprep.subr.bf16.mxu0 %v476
    %540 = vmatpush1.bf16.msra.mxu0 %v475
    %541 = vmatprep.subr.bf16.mxu0 %v478
    %542 = vmatpush1.bf16.msra.mxu0 %v477
    %543 = vmatprep.subr.bf16.mxu0 %v480
    %544 = vmatpush1.bf16.msra.mxu0 %v479
    %545 = vmatprep.subr.bf16.mxu0 %v482
    %546 = vmatpush1.bf16.msra.mxu0 %v481
    %547 = vmatprep.subr.bf16.mxu0 %v484
    %548 = vmatpush1.bf16.msra.mxu0 %v483
    %549 = vmatprep.subr.bf16.mxu0 %v486
    %550 = vmatpush1.bf16.msra.mxu0 %v485
    %551 = vmatprep.subr.bf16.mxu0 %v488
    %552 = vmatpush1.bf16.msra.mxu0 %v487
    %553 = vmatprep.subr.bf16.mxu0 %v490
    %554 = vmatpush1.bf16.msra.mxu0 %v489
    %555 = vmatprep.subr.bf16.mxu0 %v492
    %556 = vmatpush1.bf16.msra.mxu0 %v491
    %557 = vmatprep.subr.bf16.mxu0 %v494
    %558 = vmatpush1.bf16.msra.mxu0 %v493
    %559 = vmatprep.subr.bf16.mxu0 %v496
    %560 = vmatpush1.bf16.msra.mxu0 %v495
    %561 = vmatprep.subr.bf16.mxu0 %v498
    %562 = vmatpush1.bf16.msra.mxu0 %v497
    %563 = vmatprep.subr.bf16.mxu0 %v500
    %564 = vmatpush1.bf16.msra.mxu0 %v499
    %565 = vmatprep.subr.bf16.mxu0 %v502
    %566 = vmatpush1.bf16.msra.mxu0 %v501
    %567 = vmatprep.mubr.bf16.mxu0 %v81
    %568 = vmatmul.mubr.bf16.gmra.mrb[0].mxu0 %v80
    %v569 = vpop.f32.mrb[0].mxu0
    %v570 = vadd.f32 %v368, %v569
    %v571 = vpop.f32.mrb[0].mxu0
    %v572 = vadd.f32 %v372, %v571
    %v573 = vpop.f32.mrb[0].mxu0
    %v574 = vadd.f32 %v368, %v573
    %v575 = vpop.f32.mrb[0].mxu0
    %v576 = vadd.f32 %v372, %v575
    %577 = vdwg.mxu0
    %v578 = vmul.f32 %v570, 0.5
    %v579 = vmul.f32 %v572, 0.5
    %v580 = vmul.f32 %v574, 0.5
    %v581 = vmul.f32 %v576, 0.5
    %v582 = vmul.f32 %v570, 0.70710677
    %v583 = vmul.f32 %v572, 0.70710677
    %v584 = vmul.f32 %v574, 0.70710677
    %v585 = vmul.f32 %v576, 0.70710677
    %v586 = verf.f32.pop %v582
    %v587 = verf.f32.pop %v583
    %v588 = verf.f32.pop %v584
    %v589 = verf.f32.pop %v585
    %v590 = vadd.f32 %v586, 1.0
    %v591 = vadd.f32 %v587, 1.0
    %v592 = vadd.f32 %v588, 1.0
    %v593 = vadd.f32 %v589, 1.0
    %v594 = vmul.f32 %v578, %v590
    %v595 = vmul.f32 %v579, %v591
    %v596 = vmul.f32 %v580, %v592
    %v597 = vmul.f32 %v581, %v593
    %v598 = vmul.f32 %v321, %v594
    %v599 = vmul.f32 %v323, %v595
    %v600 = vmul.f32 %v325, %v596
    %v601 = vmul.f32 %v327, %v597
    %602 = vst [vmem:[#allocation7] sm:$0xff] %v598
    %603 = vst [vmem:[#allocation7 + $0x8] sm:$0xff] %v599
    %604 = vst [vmem:[#allocation7 + $0x10] sm:$0xff] %v600
    %605 = vst [vmem:[#allocation7 + $0x18] sm:$0xff] %v601
    // Predicated region
    $region22: #{tpu_custom_call.1} parent=1 // pred_check
      _
    $region23: #{tpu_custom_call.1} parent=1 // pred_check_branch
      %607 = sbr.rel (0) target = $region25
    $region24: #{tpu_custom_call.1} parent=1 // pred_region
      %s609 = ssub.s32 512, 512
      %610 = vsyncadd [#allocation4], %s609
      %s611 = sshll.u32 [#allocation7], 4
      %s612 = int_to_ptr.vmem [resolvable:$true] %s611
      %617 = dma.vmem_to_hbm [thread:$0]  %s612, 512, %s3, [#allocation4], 256, 256, 16
    $region25: #{tpu_custom_call.1} parent=1 // pred_fallthru
      _
    // Predicated region
    $region26: #{tpu_custom_call.1} parent=1 // pred_check
      _
    $region27: #{tpu_custom_call.1} parent=1 // pred_check_branch
      %619 = sbr.rel (0) target = $region29
    $region28: #{tpu_custom_call.1} parent=1 // pred_region
      %620 = dma.done [#allocation4], 512
    $region29: #{tpu_custom_call.1} parent=1 // pred_fallthru
      _
    %621 = vsyncpa [#allocation3], 1
    %622 = vsyncpa [#allocation6], 1
    %623 = vsyncpa [#allocation4], 1

// kernel: tpu_custom_call.1
$region0: #{tpu_custom_call.1}
  #allocation0 [shape = 'u32[]', space=smem, size = 0x4, offset = 0x4, fixed_abs, tag = 'smem constant byte address 0x4 - core index']
  #allocation1 [shape = 'u32[144,128]{1,0:T(1,128)}', space=vmem, size = 0x12000, scoped, tag = 'internal scratch']
  %s0 = inlined_call_operand.hbm [shape: f32[16,256], index: 0, kind: input, shape index: {}]
  %s1 = inlined_call_operand.hbm [shape: bf16[2,256,256], index: 1, kind: input, shape index: {}]
  %s2 = inlined_call_operand.vmem [shape: f32[2,1,256], index: 2, kind: input, shape index: {}]
  %s3 = inlined_call_operand.hbm [shape: f32[16,256], index: 3, kind: output, shape index: {}]
  %s4 = sld [smem:[#allocation0]]
  $region30: #{tpu_custom_call.1} parent=0
    _
  %s6 = ssub.s32 1, %s4
  %s7 = scalar_select 0, %s6, %s4
  $region1: #{tpu_custom_call.1} parent=0
    #allocation2 [shape = 'u8[16384]{0}', space=vmem, size = 0x4000, scoped, tag = 'input window, operand 0, single buffered']
    #allocation3 [shape = 's32[1]{0}', space=sflag, size = 0x4, scoped, tag = 'scoped memory for tpu_custom_call.1']
    #allocation4 [shape = 's32[1]{0}', space=sflag, size = 0x4, scoped, tag = 'scoped memory for tpu_custom_call.1']
    #allocation5 [shape = 'u8[262144]{0}', space=vmem, size = 0x40000, scoped, tag = 'input window, operand 1, single buffered']
    #allocation6 [shape = 's32[1]{0}', space=sflag, size = 0x4, scoped, tag = 'scoped memory for tpu_custom_call.1']
    #allocation7 [shape = 'u8[16384]{0}', space=vmem, size = 0x4000, scoped, tag = 'output window, operand 0, single buffered']
    %8 = vsyncpa [#allocation3], 0
    %9 = vsyncpa [#allocation6], 0
    %10 = vsyncpa [#allocation4], 0
    // Predicated region
    $region2: #{tpu_custom_call.1} parent=1 // pred_check
      _
    $region3: #{tpu_custom_call.1} parent=1 // pred_check_branch
      %12 = sbr.rel (0) target = $region5
    $region4: #{tpu_custom_call.1} parent=1 // pred_region
      %s14 = ssub.s32 512, 512
      %15 = vsyncadd [#allocation3], %s14
      %s16 = sshll.u32 [#allocation2], 4
      %s17 = int_to_ptr.vmem [resolvable:$true] %s16
      %22 = dma.hbm_to_vmem [thread:$0]  %s0, 512, %s17, [#allocation3], 256, 256, 16
    $region5: #{tpu_custom_call.1} parent=1 // pred_fallthru
      _
    // Predicated region
    $region6: #{tpu_custom_call.1} parent=1 // pred_check
      _
    $region7: #{tpu_custom_call.1} parent=1 // pred_check_branch
      %24 = sbr.rel (0) target = $region9
    $region8: #{tpu_custom_call.1} parent=1 // pred_region
      %s26 = ssub.s32 8192, 8192
      %27 = vsyncadd [#allocation6], %s26
      %s28 = sshll.u32 [#allocation5], 4
      %s29 = int_to_ptr.vmem [resolvable:$true] %s28
      %34 = dma.hbm_to_vmem [thread:$0]  %s1, 8192, %s29, [#allocation6], 128, 128, 8
    $region9: #{tpu_custom_call.1} parent=1 // pred_fallthru
      _
    // Predicated region
    $region10: #{tpu_custom_call.1} parent=1 // pred_check
      _
    $region11: #{tpu_custom_call.1} parent=1 // pred_check_branch
      %36 = sbr.rel (0) target = $region13
    $region12: #{tpu_custom_call.1} parent=1 // pred_region
      _
    $region13: #{tpu_custom_call.1} parent=1 // pred_fallthru
      _
    // Predicated region
    $region14: #{tpu_custom_call.1} parent=1 // pred_check
      _
    $region15: #{tpu_custom_call.1} parent=1 // pred_check_branch
      %38 = sbr.rel (0) target = $region17
    $region16: #{tpu_custom_call.1} parent=1 // pred_region
      %39 = dma.done [#allocation3], 512
    $region17: #{tpu_custom_call.1} parent=1 // pred_fallthru
      _
    // Predicated region
    $region18: #{tpu_custom_call.1} parent=1 // pred_check
      _
    $region19: #{tpu_custom_call.1} parent=1 // pred_check_branch
      %41 = sbr.rel (0) target = $region21
    $region20: #{tpu_custom_call.1} parent=1 // pred_region
      %42 = dma.done [#allocation6], 8192
    $region21: #{tpu_custom_call.1} parent=1 // pred_fallthru
      _
    %v43 = vld [vmem:[#allocation2] sm:$0xff]
    %v44 = vld [vmem:[#allocation2 + $0x8] sm:$0xff]
    %v45 = vld [vmem:[#allocation2 + $0x10] sm:$0xff]
    %v46 = vld [vmem:[#allocation2 + $0x18] sm:$0xff]
    %v47 = vadd.f32 %v43, %v44
    %48 = vadd.xlane.f32.xlu0 %v47
    %v49 = vpop.xlane.xlu0 %48
    %v50 = vadd.f32 %v45, %v46
    %51 = vadd.xlane.f32.xlu0 %v50
    %v52 = vpop.xlane.xlu0 %51
    %v53 = vrcp.pop 256.0
    %v54 = vmul.f32 %v49, %v53
    %v55 = vmul.f32 %v52, %v53
    %v56 = vsub.f32 %v43, %v54
    %v57 = vsub.f32 %v44, %v54
    %v58 = vsub.f32 %v45, %v55
    %v59 = vsub.f32 %v46, %v55
    %v60 = vmul.f32 %v56, %v56
    %v61 = vmul.f32 %v57, %v57
    %v62 = vmul.f32 %v58, %v58
    %v63 = vmul.f32 %v59, %v59
    %v64 = vadd.f32 %v60, %v61
    %65 = vadd.xlane.f32.xlu0 %v64
    %v66 = vpop.xlane.xlu0 %65
    %v67 = vadd.f32 %v62, %v63
    %68 = vadd.xlane.f32.xlu0 %v67
    %v69 = vpop.xlane.xlu0 %68
    %v70 = vmul.f32 %v66, %v53
    %v71 = vmul.f32 %v69, %v53
    %v72 = vadd.f32 %v70, 1e-05
    %v73 = vadd.f32 %v71, 1e-05
    %v74 = vrsqrt.pop %v72
    %v75 = vrsqrt.pop %v73
    %v76 = vmul.f32 %v56, %v74
    %v77 = vmul.f32 %v57, %v74
    %v78 = vmul.f32 %v58, %v75
    %v79 = vmul.f32 %v59, %v75
    %v80 = vpack.c.bf16 %v78, %v76
    %v81 = vpack.c.bf16 %v79, %v77
    %v82 = vld [vmem:[#allocation5] sm:$0xff]
    %v83 = vld [vmem:[#allocation5 + $0x8] sm:$0xff]
    %v84 = vld [vmem:[#allocation5 + $0x10] sm:$0xff]
    %v85 = vld [vmem:[#allocation5 + $0x18] sm:$0xff]
    %v86 = vld [vmem:[#allocation5 + $0x20] sm:$0xff]
    %v87 = vld [vmem:[#allocation5 + $0x28] sm:$0xff]
    %v88 = vld [vmem:[#allocation5 + $0x30] sm:$0xff]
    %v89 = vld [vmem:[#allocation5 + $0x38] sm:$0xff]
    %v90 = vld [vmem:[#allocation5 + $0x40] sm:$0xff]
    %v91 = vld [vmem:[#allocation5 + $0x48] sm:$0xff]
    %v92 = vld [vmem:[#allocation5 + $0x50] sm:$0xff]
    %v93 = vld [vmem:[#allocation5 + $0x58] sm:$0xff]
    %v94 = vld [vmem:[#allocation5 + $0x60] sm:$0xff]
    %v95 = vld [vmem:[#allocation5 + $0x68] sm:$0xff]
    %v96 = vld [vmem:[#allocation5 + $0x70] sm:$0xff]
    %v97 = vld [vmem:[#allocation5 + $0x78] sm:$0xff]
    %v98 = vld [vmem:[#allocation5 + $0x80] sm:$0xff]
    %v99 = vld [vmem:[#allocation5 + $0x88] sm:$0xff]
    %v100 = vld [vmem:[#allocation5 + $0x90] sm:$0xff]
    %v101 = vld [vmem:[#allocation5 + $0x98] sm:$0xff]
    %v102 = vld [vmem:[#allocation5 + $0xa0] sm:$0xff]
    %v103 = vld [vmem:[#allocation5 + $0xa8] sm:$0xff]
    %v104 = vld [vmem:[#allocation5 + $0xb0] sm:$0xff]
    %v105 = vld [vmem:[#allocation5 + $0xb8] sm:$0xff]
    %v106 = vld [vmem:[#allocation5 + $0xc0] sm:$0xff]
    %v107 = vld [vmem:[#allocation5 + $0xc8] sm:$0xff]
    %v108 = vld [vmem:[#allocation5 + $0xd0] sm:$0xff]
    %v109 = vld [vmem:[#allocation5 + $0xd8] sm:$0xff]
    %v110 = vld [vmem:[#allocation5 + $0xe0] sm:$0xff]
    %v111 = vld [vmem:[#allocation5 + $0xe8] sm:$0xff]
    %v112 = vld [vmem:[#allocation5 + $0xf0] sm:$0xff]
    %v113 = vld [vmem:[#allocation5 + $0xf8] sm:$0xff]
    %v114 = vld [vmem:[%s2] sm:$0x3]
    %v116 = vlaneseq
    %v117 = vshrl.u32 %v116, 7
    %v118 = vsub.s32 0, %v117
    %v119 = vrot.slane %v114, %v118
    %v120 = vlaneseq
    %v121 = vshrl.u32 %v120, 7
    %v122 = vsub.s32 1, %v121
    %v123 = vrot.slane %v114, %v122
    %v158 = vunpack.c.l.b16 %v82
    %v159 = vunpack.c.h.b16 %v82
    %v160 = vunpack.c.l.b16 %v83
    %v161 = vunpack.c.h.b16 %v83
    %v162 = vunpack.c.l.b16 %v84
    %v163 = vunpack.c.h.b16 %v84
    %v164 = vunpack.c.l.b16 %v85
    %v165 = vunpack.c.h.b16 %v85
    %v166 = vunpack.c.l.b16 %v86
    %v167 = vunpack.c.h.b16 %v86
    %v168 = vunpack.c.l.b16 %v87
    %v169 = vunpack.c.h.b16 %v87
    %v170 = vunpack.c.l.b16 %v88
    %v171 = vunpack.c.h.b16 %v88
    %v172 = vunpack.c.l.b16 %v89
    %v173 = vunpack.c.h.b16 %v89
    %v174 = vunpack.c.l.b16 %v90
    %v175 = vunpack.c.h.b16 %v90
    %v176 = vunpack.c.l.b16 %v91
    %v177 = vunpack.c.h.b16 %v91
    %v178 = vunpack.c.l.b16 %v92
    %v179 = vunpack.c.h.b16 %v92
    %v180 = vunpack.c.l.b16 %v93
    %v181 = vunpack.c.h.b16 %v93
    %v182 = vunpack.c.l.b16 %v94
    %v183 = vunpack.c.h.b16 %v94
    %v184 = vunpack.c.l.b16 %v95
    %v185 = vunpack.c.h.b16 %v95
    %v186 = vunpack.c.l.b16 %v96
    %v187 = vunpack.c.h.b16 %v96
    %v188 = vunpack.c.l.b16 %v97
    %v189 = vunpack.c.h.b16 %v97
    %v190 = vunpack.c.l.b16 %v98
    %v191 = vunpack.c.h.b16 %v98
    %v192 = vunpack.c.l.b16 %v99
    %v193 = vunpack.c.h.b16 %v99
    %v194 = vunpack.c.l.b16 %v100
    %v195 = vunpack.c.h.b16 %v100
    %v196 = vunpack.c.l.b16 %v101
    %v197 = vunpack.c.h.b16 %v101
    %v198 = vunpack.c.l.b16 %v102
    %v199 = vunpack.c.h.b16 %v102
    %v200 = vunpack.c.l.b16 %v103
    %v201 = vunpack.c.h.b16 %v103
    %v202 = vunpack.c.l.b16 %v104
    %v203 = vunpack.c.h.b16 %v104
    %v204 = vunpack.c.l.b16 %v105
    %v205 = vunpack.c.h.b16 %v105
    %v206 = vunpack.c.l.b16 %v106
    %v207 = vunpack.c.h.b16 %v106
    %v208 = vunpack.c.l.b16 %v107
    %v209 = vunpack.c.h.b16 %v107
    %v210 = vunpack.c.l.b16 %v108
    %v211 = vunpack.c.h.b16 %v108
    %v212 = vunpack.c.l.b16 %v109
    %v213 = vunpack.c.h.b16 %v109
    %v214 = vunpack.c.l.b16 %v110
    %v215 = vunpack.c.h.b16 %v110
    %v216 = vunpack.c.l.b16 %v111
    %v217 = vunpack.c.h.b16 %v111
    %v218 = vunpack.c.l.b16 %v112
    %v219 = vunpack.c.h.b16 %v112
    %v220 = vunpack.c.l.b16 %v113
    %v221 = vunpack.c.h.b16 %v113
    %v222 = vpack.c.b16 %v160, %v158
    %v223 = vpack.c.b16 %v161, %v159
    %v224 = vpack.c.b16 %v164, %v162
    %v225 = vpack.c.b16 %v165, %v163
    %v226 = vpack.c.b16 %v168, %v166
    %v227 = vpack.c.b16 %v169, %v167
    %v228 = vpack.c.b16 %v172, %v170
    %v229 = vpack.c.b16 %v173, %v171
    %v230 = vpack.c.b16 %v176, %v174
    %v231 = vpack.c.b16 %v177, %v175
    %v232 = vpack.c.b16 %v180, %v178
    %v233 = vpack.c.b16 %v181, %v179
    %v234 = vpack.c.b16 %v184, %v182
    %v235 = vpack.c.b16 %v185, %v183
    %v236 = vpack.c.b16 %v188, %v186
    %v237 = vpack.c.b16 %v189, %v187
    %v238 = vpack.c.b16 %v192, %v190
    %v239 = vpack.c.b16 %v193, %v191
    %v240 = vpack.c.b16 %v196, %v194
    %v241 = vpack.c.b16 %v197, %v195
    %v242 = vpack.c.b16 %v200, %v198
    %v243 = vpack.c.b16 %v201, %v199
    %v244 = vpack.c.b16 %v204, %v202
    %v245 = vpack.c.b16 %v205, %v203
    %v246 = vpack.c.b16 %v208, %v206
    %v247 = vpack.c.b16 %v209, %v207
    %v248 = vpack.c.b16 %v212, %v210
    %v249 = vpack.c.b16 %v213, %v211
    %v250 = vpack.c.b16 %v216, %v214
    %v251 = vpack.c.b16 %v217, %v215
    %v252 = vpack.c.b16 %v220, %v218
    %v253 = vpack.c.b16 %v221, %v219
    %286 = vmatprep.subr.bf16.mxu0 %v223
    %287 = vmatpush1.bf16.msra.mxu0 %v222
    %288 = vmatprep.subr.bf16.mxu0 %v225
    %289 = vmatpush1.bf16.msra.mxu0 %v224
    %290 = vmatprep.subr.bf16.mxu0 %v227
    %291 = vmatpush1.bf16.msra.mxu0 %v226
    %292 = vmatprep.subr.bf16.mxu0 %v229
    %293 = vmatpush1.bf16.msra.mxu0 %v228
    %294 = vmatprep.subr.bf16.mxu0 %v231
    %295 = vmatpush1.bf16.msra.mxu0 %v230
    %296 = vmatprep.subr.bf16.mxu0 %v233
    %297 = vmatpush1.bf16.msra.mxu0 %v232
    %298 = vmatprep.subr.bf16.mxu0 %v235
    %299 = vmatpush1.bf16.msra.mxu0 %v234
    %300 = vmatprep.subr.bf16.mxu0 %v237
    %301 = vmatpush1.bf16.msra.mxu0 %v236
    %302 = vmatprep.subr.bf16.mxu0 %v239
    %303 = vmatpush1.bf16.msra.mxu0 %v238
    %304 = vmatprep.subr.bf16.mxu0 %v241
    %305 = vmatpush1.bf16.msra.mxu0 %v240
    %306 = vmatprep.subr.bf16.mxu0 %v243
    %307 = vmatpush1.bf16.msra.mxu0 %v242
    %308 = vmatprep.subr.bf16.mxu0 %v245
    %309 = vmatpush1.bf16.msra.mxu0 %v244
    %310 = vmatprep.subr.bf16.mxu0 %v247
    %311 = vmatpush1.bf16.msra.mxu0 %v246
    %312 = vmatprep.subr.bf16.mxu0 %v249
    %313 = vmatpush1.bf16.msra.mxu0 %v248
    %314 = vmatprep.subr.bf16.mxu0 %v251
    %315 = vmatpush1.bf16.msra.mxu0 %v250
    %316 = vmatprep.subr.bf16.mxu0 %v253
    %317 = vmatpush1.bf16.msra.mxu0 %v252
    %318 = vmatprep.mubr.bf16.mxu0 %v81
    %319 = vmatmul.mubr.bf16.gmra.mrb[0].mxu0 %v80
    %v320 = vpop.f32.mrb[0].mxu0
    %v321 = vadd.f32 %v119, %v320
    %v322 = vpop.f32.mrb[0].mxu0
    %v323 = vadd.f32 %v123, %v322
    %v324 = vpop.f32.mrb[0].mxu0
    %v325 = vadd.f32 %v119, %v324
    %v326 = vpop.f32.mrb[0].mxu0
    %v327 = vadd.f32 %v123, %v326
    %328 = vdwg.mxu0
    %s329 = scalar_lea.vmem [#allocation5], 256
    %v330 = vld [vmem:[%s329] sm:$0xff]
    %v331 = vld [vmem:[%s329 + $0x8] sm:$0xff]
    %v332 = vld [vmem:[%s329 + $0x10] sm:$0xff]
    %v333 = vld [vmem:[%s329 + $0x18] sm:$0xff]
    %v334 = vld [vmem:[%s329 + $0x20] sm:$0xff]
    %v335 = vld [vmem:[%s329 + $0x28] sm:$0xff]
    %v336 = vld [vmem:[%s329 + $0x30] sm:$0xff]
    %v337 = vld [vmem:[%s329 + $0x38] sm:$0xff]
    %v338 = vld [vmem:[%s329 + $0x40] sm:$0xff]
    %v339 = vld [vmem:[%s329 + $0x48] sm:$0xff]
    %v340 = vld [vmem:[%s329 + $0x50] sm:$0xff]
    %v341 = vld [vmem:[%s329 + $0x58] sm:$0xff]
    %v342 = vld [vmem:[%s329 + $0x60] sm:$0xff]
    %v343 = vld [vmem:[%s329 + $0x68] sm:$0xff]
    %v344 = vld [vmem:[%s329 + $0x70] sm:$0xff]
    %v345 = vld [vmem:[%s329 + $0x78] sm:$0xff]
    %v346 = vld [vmem:[%s329 + $0x80] sm:$0xff]
    %v347 = vld [vmem:[%s329 + $0x88] sm:$0xff]
    %v348 = vld [vmem:[%s329 + $0x90] sm:$0xff]
    %v349 = vld [vmem:[%s329 + $0x98] sm:$0xff]
    %v350 = vld [vmem:[%s329 + $0xa0] sm:$0xff]
    %v351 = vld [vmem:[%s329 + $0xa8] sm:$0xff]
    %v352 = vld [vmem:[%s329 + $0xb0] sm:$0xff]
    %v353 = vld [vmem:[%s329 + $0xb8] sm:$0xff]
    %v354 = vld [vmem:[%s329 + $0xc0] sm:$0xff]
    %v355 = vld [vmem:[%s329 + $0xc8] sm:$0xff]
    %v356 = vld [vmem:[%s329 + $0xd0] sm:$0xff]
    %v357 = vld [vmem:[%s329 + $0xd8] sm:$0xff]
    %v358 = vld [vmem:[%s329 + $0xe0] sm:$0xff]
    %v359 = vld [vmem:[%s329 + $0xe8] sm:$0xff]
    %v360 = vld [vmem:[%s329 + $0xf0] sm:$0xff]
    %v361 = vld [vmem:[%s329 + $0xf8] sm:$0xff]
    %s362 = scalar_lea.vmem %s2, 2
    %v363 = vld [vmem:[%s362] sm:$0x3]
    %v365 = vlaneseq
    %v366 = vshrl.u32 %v365, 7
    %v367 = vsub.s32 0, %v366
    %v368 = vrot.slane %v363, %v367
    %v369 = vlaneseq
    %v370 = vshrl.u32 %v369, 7
    %v371 = vsub.s32 1, %v370
    %v372 = vrot.slane %v363, %v371
    %v407 = vunpack.c.l.b16 %v330
    %v408 = vunpack.c.h.b16 %v330
    %v409 = vunpack.c.l.b16 %v331
    %v410 = vunpack.c.h.b16 %v331
    %v411 = vunpack.c.l.b16 %v332
    %v412 = vunpack.c.h.b16 %v332
    %v413 = vunpack.c.l.b16 %v333
    %v414 = vunpack.c.h.b16 %v333
    %v415 = vunpack.c.l.b16 %v334
    %v416 = vunpack.c.h.b16 %v334
    %v417 = vunpack.c.l.b16 %v335
    %v418 = vunpack.c.h.b16 %v335
    %v419 = vunpack.c.l.b16 %v336
    %v420 = vunpack.c.h.b16 %v336
    %v421 = vunpack.c.l.b16 %v337
    %v422 = vunpack.c.h.b16 %v337
    %v423 = vunpack.c.l.b16 %v338
    %v424 = vunpack.c.h.b16 %v338
    %v425 = vunpack.c.l.b16 %v339
    %v426 = vunpack.c.h.b16 %v339
    %v427 = vunpack.c.l.b16 %v340
    %v428 = vunpack.c.h.b16 %v340
    %v429 = vunpack.c.l.b16 %v341
    %v430 = vunpack.c.h.b16 %v341
    %v431 = vunpack.c.l.b16 %v342
    %v432 = vunpack.c.h.b16 %v342
    %v433 = vunpack.c.l.b16 %v343
    %v434 = vunpack.c.h.b16 %v343
    %v435 = vunpack.c.l.b16 %v344
    %v436 = vunpack.c.h.b16 %v344
    %v437 = vunpack.c.l.b16 %v345
    %v438 = vunpack.c.h.b16 %v345
    %v439 = vunpack.c.l.b16 %v346
    %v440 = vunpack.c.h.b16 %v346
    %v441 = vunpack.c.l.b16 %v347
    %v442 = vunpack.c.h.b16 %v347
    %v443 = vunpack.c.l.b16 %v348
    %v444 = vunpack.c.h.b16 %v348
    %v445 = vunpack.c.l.b16 %v349
    %v446 = vunpack.c.h.b16 %v349
    %v447 = vunpack.c.l.b16 %v350
    %v448 = vunpack.c.h.b16 %v350
    %v449 = vunpack.c.l.b16 %v351
    %v450 = vunpack.c.h.b16 %v351
    %v451 = vunpack.c.l.b16 %v352
    %v452 = vunpack.c.h.b16 %v352
    %v453 = vunpack.c.l.b16 %v353
    %v454 = vunpack.c.h.b16 %v353
    %v455 = vunpack.c.l.b16 %v354
    %v456 = vunpack.c.h.b16 %v354
    %v457 = vunpack.c.l.b16 %v355
    %v458 = vunpack.c.h.b16 %v355
    %v459 = vunpack.c.l.b16 %v356
    %v460 = vunpack.c.h.b16 %v356
    %v461 = vunpack.c.l.b16 %v357
    %v462 = vunpack.c.h.b16 %v357
    %v463 = vunpack.c.l.b16 %v358
    %v464 = vunpack.c.h.b16 %v358
    %v465 = vunpack.c.l.b16 %v359
    %v466 = vunpack.c.h.b16 %v359
    %v467 = vunpack.c.l.b16 %v360
    %v468 = vunpack.c.h.b16 %v360
    %v469 = vunpack.c.l.b16 %v361
    %v470 = vunpack.c.h.b16 %v361
    %v471 = vpack.c.b16 %v409, %v407
    %v472 = vpack.c.b16 %v410, %v408
    %v473 = vpack.c.b16 %v413, %v411
    %v474 = vpack.c.b16 %v414, %v412
    %v475 = vpack.c.b16 %v417, %v415
    %v476 = vpack.c.b16 %v418, %v416
    %v477 = vpack.c.b16 %v421, %v419
    %v478 = vpack.c.b16 %v422, %v420
    %v479 = vpack.c.b16 %v425, %v423
    %v480 = vpack.c.b16 %v426, %v424
    %v481 = vpack.c.b16 %v429, %v427
    %v482 = vpack.c.b16 %v430, %v428
    %v483 = vpack.c.b16 %v433, %v431
    %v484 = vpack.c.b16 %v434, %v432
    %v485 = vpack.c.b16 %v437, %v435
    %v486 = vpack.c.b16 %v438, %v436
    %v487 = vpack.c.b16 %v441, %v439
    %v488 = vpack.c.b16 %v442, %v440
    %v489 = vpack.c.b16 %v445, %v443
    %v490 = vpack.c.b16 %v446, %v444
    %v491 = vpack.c.b16 %v449, %v447
    %v492 = vpack.c.b16 %v450, %v448
    %v493 = vpack.c.b16 %v453, %v451
    %v494 = vpack.c.b16 %v454, %v452
    %v495 = vpack.c.b16 %v457, %v455
    %v496 = vpack.c.b16 %v458, %v456
    %v497 = vpack.c.b16 %v461, %v459
    %v498 = vpack.c.b16 %v462, %v460
    %v499 = vpack.c.b16 %v465, %v463
    %v500 = vpack.c.b16 %v466, %v464
    %v501 = vpack.c.b16 %v469, %v467
    %v502 = vpack.c.b16 %v470, %v468
    %535 = vmatprep.subr.bf16.mxu0 %v472
    %536 = vmatpush1.bf16.msra.mxu0 %v471
    %537 = vmatprep.subr.bf16.mxu0 %v474
    %538 = vmatpush1.bf16.msra.mxu0 %v473
    %539 = vmatprep.subr.bf16.mxu0 %v476
    %540 = vmatpush1.bf16.msra.mxu0 %v475
    %541 = vmatprep.subr.bf16.mxu0 %v478
    %542 = vmatpush1.bf16.msra.mxu0 %v477
    %543 = vmatprep.subr.bf16.mxu0 %v480
    %544 = vmatpush1.bf16.msra.mxu0 %v479
    %545 = vmatprep.subr.bf16.mxu0 %v482
    %546 = vmatpush1.bf16.msra.mxu0 %v481
    %547 = vmatprep.subr.bf16.mxu0 %v484
    %548 = vmatpush1.bf16.msra.mxu0 %v483
    %549 = vmatprep.subr.bf16.mxu0 %v486
    %550 = vmatpush1.bf16.msra.mxu0 %v485
    %551 = vmatprep.subr.bf16.mxu0 %v488
    %552 = vmatpush1.bf16.msra.mxu0 %v487
    %553 = vmatprep.subr.bf16.mxu0 %v490
    %554 = vmatpush1.bf16.msra.mxu0 %v489
    %555 = vmatprep.subr.bf16.mxu0 %v492
    %556 = vmatpush1.bf16.msra.mxu0 %v491
    %557 = vmatprep.subr.bf16.mxu0 %v494
    %558 = vmatpush1.bf16.msra.mxu0 %v493
    %559 = vmatprep.subr.bf16.mxu0 %v496
    %560 = vmatpush1.bf16.msra.mxu0 %v495
    %561 = vmatprep.subr.bf16.mxu0 %v498
    %562 = vmatpush1.bf16.msra.mxu0 %v497
    %563 = vmatprep.subr.bf16.mxu0 %v500
    %564 = vmatpush1.bf16.msra.mxu0 %v499
    %565 = vmatprep.subr.bf16.mxu0 %v502
    %566 = vmatpush1.bf16.msra.mxu0 %v501
    %567 = vmatprep.mubr.bf16.mxu0 %v81
    %568 = vmatmul.mubr.bf16.gmra.mrb[0].mxu0 %v80
    %v569 = vpop.f32.mrb[0].mxu0
    %v570 = vadd.f32 %v368, %v569
    %v571 = vpop.f32.mrb[0].mxu0
    %v572 = vadd.f32 %v372, %v571
    %v573 = vpop.f32.mrb[0].mxu0
    %v574 = vadd.f32 %v368, %v573
    %v575 = vpop.f32.mrb[0].mxu0
    %v576 = vadd.f32 %v372, %v575
    %577 = vdwg.mxu0
    %v578 = vmul.f32 %v570, 0.5
    %v579 = vmul.f32 %v572, 0.5
    %v580 = vmul.f32 %v574, 0.5
    %v581 = vmul.f32 %v576, 0.5
    %v582 = vmul.f32 %v570, 0.70710677
    %v583 = vmul.f32 %v572, 0.70710677
    %v584 = vmul.f32 %v574, 0.70710677
    %v585 = vmul.f32 %v576, 0.70710677
    %v586 = verf.f32.pop %v582
    %v587 = verf.f32.pop %v583
    %v588 = verf.f32.pop %v584
    %v589 = verf.f32.pop %v585
    %v590 = vadd.f32 %v586, 1.0
    %v591 = vadd.f32 %v587, 1.0
    %v592 = vadd.f32 %v588, 1.0
    %v593 = vadd.f32 %v589, 1.0
    %v594 = vmul.f32 %v578, %v590
    %v595 = vmul.f32 %v579, %v591
    %v596 = vmul.f32 %v580, %v592
    %v597 = vmul.f32 %v581, %v593
    %v598 = vmul.f32 %v321, %v594
    %v599 = vmul.f32 %v323, %v595
    %v600 = vmul.f32 %v325, %v596
    %v601 = vmul.f32 %v327, %v597
    %602 = vst [vmem:[#allocation7] sm:$0xff] %v598
    %603 = vst [vmem:[#allocation7 + $0x8] sm:$0xff] %v599
    %604 = vst [vmem:[#allocation7 + $0x10] sm:$0xff] %v600
    %605 = vst [vmem:[#allocation7 + $0x18] sm:$0xff] %v601
    // Predicated region
    $region22: #{tpu_custom_call.1} parent=1 // pred_check
      _
    $region23: #{tpu_custom_call.1} parent=1 // pred_check_branch
      %607 = sbr.rel (0) target = $region25
    $region24: #{tpu_custom_call.1} parent=1 // pred_region
      %s609 = ssub.s32 512, 512
      %610 = vsyncadd [#allocation4], %s609
      %s611 = sshll.u32 [#allocation7], 4
      %s612 = int_to_ptr.vmem [resolvable:$true] %s611
      %617 = dma.vmem_to_hbm [thread:$0]  %s612, 512, %s3, [#allocation4], 256, 256, 16
    $region25: #{tpu_custom_call.1} parent=1 // pred_fallthru
      _
    // Predicated region
    $region26: #{tpu_custom_call.1} parent=1 // pred_check
      _
    $region27: #{tpu_custom_call.1} parent=1 // pred_check_branch
      %619 = sbr.rel (0) target = $region29
    $region28: #{tpu_custom_call.1} parent=1 // pred_region
      %620 = dma.done [#allocation4], 512
    $region29: #{tpu_custom_call.1} parent=1 // pred_fallthru
      _
    %621 = vsyncpa [#allocation3], 1
    %622 = vsyncpa [#allocation6], 1
    %623 = vsyncpa [#allocation4], 1

</llo_original>
